<compile_context>
chip_gen: v5e
topology: v5e:2x2
jax: 0.10.0
libtpu: 0.0.40
codegen_flags: <defaults>
</compile_context>

<pallas_src>
import numpy as np
import jax
import jax.numpy as jnp
from jax import lax
from jax.experimental import pallas as pl
from jax.experimental.pallas import tpu as pltpu


def _stack_encoder_kernel(x_ref, w1_ref, b1_ref, w2_ref, b2_ref,
                          rsel_e_ref, rsel_o_ref, csel_e_ref, csel_o_ref,
                          trace_ref, pool_ref):
    """Fused conv3x3+ReLU -> conv3x3+ReLU -> maxpool2x2(s2) for Nb stacked images.

    x_ref:      (Nb*H, P)        f32   lane-padded flattened-NHWC input rows
    w1_ref:     (3*P, P)         bf16  banded conv1 weights, 3 kh-blocks stacked on K
    b1_ref:     (1, P)           f32   conv1 bias tiled along lanes (zero padded)
    w2_ref:     (3*P, P)         bf16  banded conv2 weights
    b2_ref:     (1, P)           f32
    rsel_*_ref: (Nb*Hp, Nb*H)    bf16  even/odd row selection (skips contaminated rows)
    csel_*_ref: (P, Wp*Cout)     bf16  even/odd column-block selection
    trace_ref:  (Nb, Ho2, Wo2*Cout)  bf16  pre-pool activation (x_trace)
    pool_ref:   (Nb, Hp,  Wp*Cout)   f32   pooled output
    """
    nb, ho2, l2 = trace_ref.shape
    hp = pool_ref.shape[1]
    rows = x_ref.shape[0]                      # Nb*H
    h = rows // nb

    def taps(a):
        # K-concat of row-shifted slabs [a(i), a(i+1), a(i+2)]: sublane rolls on the XLU
        # (rows is a multiple of 8, every lane piece is a multiple of 128 -> aligned).
        return jnp.concatenate(
            [a,
             pltpu.roll(a, rows - 1, axis=0),
             pltpu.roll(a, rows - 2, axis=0)],
            axis=1).astype(jnp.bfloat16)

    x = x_ref[...]                                                     # (rows, P) f32

    # conv1 + ReLU: single fat MXU matmul (K = 3*P), f32 accumulation.
    h1 = jnp.dot(taps(x), w1_ref[...], preferred_element_type=jnp.float32)
    h1 = jnp.maximum(h1 + b1_ref[...], 0.0)                            # (rows, P) f32

    # conv2 + ReLU (h1 never leaves VMEM/vregs).
    y2 = jnp.dot(taps(h1), w2_ref[...], preferred_element_type=jnp.float32)
    y2 = jnp.maximum(y2 + b2_ref[...], 0.0)                            # (rows, P) f32
    y2b = y2.astype(jnp.bfloat16)

    # x_trace: per image, drop the contaminated tail rows and the zero lane padding.
    for b in range(nb):
        trace_ref[b] = y2b[b * h:b * h + ho2, :l2]

    # MaxPool2d(2, 2), floor mode.  Row-pair max + even-row compaction, then column-pair
    # max + even-column compaction, each as a pair of tiny bf16 selection matmuls on the
    # otherwise-idle MXU (only valid rows/columns are ever selected).
    rowmax = jnp.maximum(
        jnp.dot(rsel_e_ref[...], y2b, preferred_element_type=jnp.float32),
        jnp.dot(rsel_o_ref[...], y2b, preferred_element_type=jnp.float32))
    rowmax = rowmax.astype(jnp.bfloat16)       # entries already bf16 values -> exact
    pooled = jnp.maximum(
        jnp.dot(rowmax, csel_e_ref[...], preferred_element_type=jnp.float32),
        jnp.dot(rowmax, csel_o_ref[...], preferred_element_type=jnp.float32))
    for b in range(nb):
        pool_ref[b] = pooled[b * hp:(b + 1) * hp, :]


def _banded_conv_weights(w_hwio, w_in, pad_k, pad_n):
    """(3,3,Cin,Cout) HWIO weights -> (3*pad_k, pad_n) K-stacked banded matrix.

    Block kh rows (j+kw)*Cin+ci, col j*Cout+co hold w[kh,kw,ci,co]; everything else
    (including lane/K padding) is zero, so a valid 3x3 conv on the flattened (H, W*Cin)
    view is  y[i] = [x[i] | x[i+1] | x[i+2]] @ W_cat.
    """
    kh_n, kw_n, cin, cout = w_hwio.shape
    wo = w_in - kw_n + 1
    pieces = []
    for kh in range(kh_n):
        b = jnp.zeros((w_in * cin, wo * cout), jnp.float32)
        for kw in range(kw_n):
            shift = jnp.eye(w_in, wo, k=-kw, dtype=jnp.float32)
            b = b + jnp.kron(shift, w_hwio[kh, kw].astype(jnp.float32))
        pieces.append(jnp.pad(b, ((0, pad_k - w_in * cin), (0, pad_n - wo * cout))))
    return jnp.concatenate(pieces, axis=0).astype(jnp.bfloat16)


def _pool_row_select(nb, h, hp):
    """0/1 matrices picking even / odd rows of each 2x-row pool pair, skipping the
    contaminated tail rows of every image block."""
    e = np.zeros((nb * hp, nb * h), np.float32)
    o = np.zeros((nb * hp, nb * h), np.float32)
    for b in range(nb):
        for r in range(hp):
            e[b * hp + r, b * h + 2 * r] = 1.0
            o[b * hp + r, b * h + 2 * r + 1] = 1.0
    return jnp.asarray(e, jnp.bfloat16), jnp.asarray(o, jnp.bfloat16)


def _pool_col_select(wo2, cout, pad_k):
    """0/1 matrices picking even / odd spatial-column blocks of width Cout."""
    wp = wo2 // 2
    e = np.zeros((pad_k, wp * cout), np.float32)
    o = np.zeros((pad_k, wp * cout), np.float32)
    for j in range(wp):
        e[(2 * j) * cout:(2 * j) * cout + cout, j * cout:j * cout + cout] = np.eye(cout)
        o[(2 * j + 1) * cout:(2 * j + 1) * cout + cout, j * cout:j * cout + cout] = np.eye(cout)
    return jnp.asarray(e, jnp.bfloat16), jnp.asarray(o, jnp.bfloat16)


def stack_encoder_forward(x_nhwc, params, *, images_per_step=None):
    """Matches StackEncoder.forward semantics in NHWC layout: returns (out, x_trace).

    out is f32, x_trace is bf16 (deliberate: halves the dominant HBM writeback)."""
    w1, b1, w2, b2 = params                       # HWIO weights, (Cout,) biases
    N, H, W, Cin = x_nhwc.shape
    Cout = w1.shape[-1]
    Ho1, Wo1 = H - 2, W - 2
    Ho2, Wo2 = Ho1 - 2, Wo1 - 2
    Hp, Wp = Ho2 // 2, Wo2 // 2
    L2, Lp = Wo2 * Cout, Wp * Cout
    assert H % 8 == 0, "row-slab stacking assumes H is a multiple of 8"

    # Lane-padded slab width (all concats / intermediates stay 128-aligned).
    max_lane = max(W * Cin, Wo1 * Cout, Wo2 * Cout)
    P = ((max_lane + 127) // 128) * 128

    # Images folded into the M dimension per grid step.
    nb = images_per_step if images_per_step is not None else min(N, 8)
    while N % nb:
        nb -= 1
    G = N // nb

    # Banded weights (bf16 MXU operands) and lane-tiled biases (f32).
    w1cat = _banded_conv_weights(w1, W, P, P)        # (3P, P)
    w2cat = _banded_conv_weights(w2, Wo1, P, P)      # (3P, P)
    b1pad = jnp.pad(jnp.tile(b1.astype(jnp.float32), Wo1), (0, P - Wo1 * Cout)).reshape(1, P)
    b2pad = jnp.pad(jnp.tile(b2.astype(jnp.float32), Wo2), (0, P - Wo2 * Cout)).reshape(1, P)

    # Pool selection matrices (compile-time constants).
    rsel_e, rsel_o = _pool_row_select(nb, H, Hp)     # (nb*Hp, nb*H)
    csel_e, csel_o = _pool_col_select(Wo2, Cout, P)  # (P, Lp)

    # Lane-dense, lane-padded f32 input slab (rolls/concat stay in f32 inside the kernel).
    x_flat = x_nhwc.astype(jnp.float32).reshape(N * H, W * Cin)
    x_pad = jnp.pad(x_flat, ((0, 0), (0, P - W * Cin)))

    trace_flat, pool_flat = pl.pallas_call(
        _stack_encoder_kernel,
        out_shape=(
            jax.ShapeDtypeStruct((N, Ho2, L2), jnp.bfloat16),   # x_trace (flat, bf16)
            jax.ShapeDtypeStruct((N, Hp, Lp), jnp.float32),     # pooled  (flat)
        ),
        grid=(G,),
        in_specs=[
            pl.BlockSpec((nb * H, P), lambda g: (g, 0)),
            pl.BlockSpec((3 * P, P), lambda g: (0, 0)),
            pl.BlockSpec((1, P), lambda g: (0, 0)),
            pl.BlockSpec((3 * P, P), lambda g: (0, 0)),
            pl.BlockSpec((1, P), lambda g: (0, 0)),
            pl.BlockSpec((nb * Hp, nb * H), lambda g: (0, 0)),
            pl.BlockSpec((nb * Hp, nb * H), lambda g: (0, 0)),
            pl.BlockSpec((P, Lp), lambda g: (0, 0)),
            pl.BlockSpec((P, Lp), lambda g: (0, 0)),
        ],
        out_specs=(
            pl.BlockSpec((nb, Ho2, L2), lambda g: (g, 0, 0)),
            pl.BlockSpec((nb, Hp, Lp), lambda g: (g, 0, 0)),
        ),
        compiler_params=pltpu.CompilerParams(
            dimension_semantics=("parallel",),
        ),
    )(x_pad, w1cat, b1pad, w2cat, b2pad, rsel_e, rsel_o, csel_e, csel_o)

    # Un-flatten the lane-dense slabs (cheap metadata reshapes in the wrapper).
    x_trace = trace_flat.reshape(N, Ho2, Wo2, Cout)
    out = pool_flat.reshape(N, Hp, Wp, Cout)
    return out, x_trace


def stack_encoder_forward_nchw(x_nchw, params):
    """PyTorch-layout adapter (NCHW in / NCHW out), mirroring StackEncoder.forward."""
    out, trace = stack_encoder_forward(jnp.transpose(x_nchw, (0, 2, 3, 1)), params)
    return jnp.transpose(out, (0, 3, 1, 2)), jnp.transpose(trace, (0, 3, 1, 2))


def init_params(key, in_channels, out_channels):
    k1, k2, k3, k4 = jax.random.split(key, 4)
    # Deterministic synthetic init (PyTorch conv weight layout OIHW -> HWIO).
    fan1 = in_channels * 9
    fan2 = out_channels * 9
    w1 = jax.random.normal(k1, (out_channels, in_channels, 3, 3), jnp.float32) / np.sqrt(fan1)
    b1 = jax.random.normal(k2, (out_channels,), jnp.float32) * 0.01
    w2 = jax.random.normal(k3, (out_channels, out_channels, 3, 3), jnp.float32) / np.sqrt(fan2)
    b2 = jax.random.normal(k4, (out_channels,), jnp.float32) * 0.01
    return (jnp.transpose(w1, (2, 3, 1, 0)), b1, jnp.transpose(w2, (2, 3, 1, 0)), b2)


def _reference_forward(x_nhwc, params):
    """Plain-JAX reference mirroring the PyTorch module (bf16 matmul / f32 accumulation)."""
    w1, b1, w2, b2 = params
    xb = x_nhwc.astype(jnp.bfloat16)
    dn = lax.conv_dimension_numbers(xb.shape, w1.shape, ("NHWC", "HWIO", "NHWC"))
    h = lax.conv_general_dilated(xb, w1.astype(jnp.bfloat16), (1, 1), "VALID",
                                 dimension_numbers=dn,
                                 preferred_element_type=jnp.float32)
    h = jnp.maximum(h + b1[None, None, None, :], 0.0).astype(jnp.bfloat16)
    dn2 = lax.conv_dimension_numbers(h.shape, w2.shape, ("NHWC", "HWIO", "NHWC"))
    t = lax.conv_general_dilated(h, w2.astype(jnp.bfloat16), (1, 1), "VALID",
                                 dimension_numbers=dn2,
                                 preferred_element_type=jnp.float32)
    t = jnp.maximum(t + b2[None, None, None, :], 0.0)
    p = lax.reduce_window(t, -jnp.inf, lax.max, (1, 2, 2, 1), (1, 2, 2, 1), "VALID")
    return p, t


if __name__ == "__main__":
    key = jax.random.PRNGKey(0)
    kx, kp = jax.random.split(key)

    N, Cin, Cout, S = 2, 4, 8, 16
    x_nhwc = jax.random.normal(kx, (N, S, S, Cin), jnp.float32)   # NHWC end-to-end
    params = init_params(kp, Cin, Cout)

    fwd = jax.jit(stack_encoder_forward)
    out, x_trace = fwd(x_nhwc, params)
    out = jax.block_until_ready(out)
    x_trace = jax.block_until_ready(x_trace)

    assert out.shape == (N, (S - 4) // 2, (S - 4) // 2, Cout), out.shape
    assert x_trace.shape == (N, S - 4, S - 4, Cout), x_trace.shape

    ref_out, ref_trace = _reference_forward(x_nhwc, params)
    np.testing.assert_allclose(np.asarray(out, dtype=np.float32),
                               np.asarray(ref_out), atol=2e-2, rtol=2e-2)
    np.testing.assert_allclose(np.asarray(x_trace.astype(jnp.float32)),
                               np.asarray(ref_trace), atol=2e-2, rtol=2e-2)

    # PyTorch-layout (NCHW) adapter parity check.
    x_nchw = jnp.transpose(x_nhwc, (0, 3, 1, 2))
    out_c, trace_c = stack_encoder_forward_nchw(x_nchw, params)
    out_c = jax.block_until_ready(out_c)
    trace_c = jax.block_until_ready(trace_c)
    np.testing.assert_allclose(np.asarray(out_c, dtype=np.float32),
                               np.asarray(jnp.transpose(ref_out, (0, 3, 1, 2))),
                               atol=2e-2, rtol=2e-2)
    np.testing.assert_allclose(np.asarray(trace_c.astype(jnp.float32)),
                               np.asarray(jnp.transpose(ref_trace, (0, 3, 1, 2))),
                               atol=2e-2, rtol=2e-2)

    print("KERNEL_OK")
</pallas_src>

<mosaic_0001>
module attributes {stable_mosaic.version = 11 : i64} {
  func.func @_stack_encoder_kernel(%arg0: i32, %arg1: memref<32x128xf32, #tpu.memory_space<vmem>>, %arg2: memref<384x128xbf16, #tpu.memory_space<vmem>>, %arg3: memref<1x128xf32, #tpu.memory_space<vmem>>, %arg4: memref<384x128xbf16, #tpu.memory_space<vmem>>, %arg5: memref<1x128xf32, #tpu.memory_space<vmem>>, %arg6: memref<12x32xbf16, #tpu.memory_space<vmem>>, %arg7: memref<12x32xbf16, #tpu.memory_space<vmem>>, %arg8: memref<128x48xbf16, #tpu.memory_space<vmem>>, %arg9: memref<128x48xbf16, #tpu.memory_space<vmem>>, %arg10: memref<2x12x96xbf16, #tpu.memory_space<vmem>>, %arg11: memref<2x6x48xf32, #tpu.memory_space<vmem>>) attributes {dimension_semantics = [#tpu.dimension_semantics<parallel>], iteration_bounds = array<i64: 1>, scalar_prefetch = 0 : i64, scratch_operands = 0 : i64, tpu.core_type = #tpu.core_type<tc>, window_params = [{transform_indices = @transform_0, window_bounds = array<i64: 32, 128>}, {pipeline_mode = #tpu.pipeline_mode<synchronous>, transform_indices = @transform_1, window_bounds = array<i64: 384, 128>}, {pipeline_mode = #tpu.pipeline_mode<synchronous>, transform_indices = @transform_2, window_bounds = array<i64: 1, 128>}, {pipeline_mode = #tpu.pipeline_mode<synchronous>, transform_indices = @transform_3, window_bounds = array<i64: 384, 128>}, {pipeline_mode = #tpu.pipeline_mode<synchronous>, transform_indices = @transform_4, window_bounds = array<i64: 1, 128>}, {pipeline_mode = #tpu.pipeline_mode<synchronous>, transform_indices = @transform_5, window_bounds = array<i64: 12, 32>}, {pipeline_mode = #tpu.pipeline_mode<synchronous>, transform_indices = @transform_6, window_bounds = array<i64: 12, 32>}, {pipeline_mode = #tpu.pipeline_mode<synchronous>, transform_indices = @transform_7, window_bounds = array<i64: 128, 48>}, {pipeline_mode = #tpu.pipeline_mode<synchronous>, transform_indices = @transform_8, window_bounds = array<i64: 128, 48>}, {transform_indices = @transform_9, window_bounds = array<i64: 2, 12, 96>}, {transform_indices = @transform_10, window_bounds = array<i64: 2, 6, 48>}]} {
    %c0 = arith.constant 0 : index
    %c0_0 = arith.constant 0 : index
    %0 = vector.load %arg1[%c0, %c0_0] : memref<32x128xf32, #tpu.memory_space<vmem>>, vector<32x128xf32>
    %c31_i32 = arith.constant 31 : i32
    %1 = tpu.dynamic_rotate %0 by %c31_i32 dim 0 : vector<32x128xf32>, i32 -> vector<32x128xf32>
    %c30_i32 = arith.constant 30 : i32
    %2 = tpu.dynamic_rotate %0 by %c30_i32 dim 0 : vector<32x128xf32>, i32 -> vector<32x128xf32>
    %3 = tpu.concatenate %0, %1, %2 in 1 : vector<32x128xf32>, vector<32x128xf32>, vector<32x128xf32> -> vector<32x384xf32>
    %4 = arith.truncf %3 : vector<32x384xf32> to vector<32x384xbf16>
    %c0_1 = arith.constant 0 : index
    %c0_2 = arith.constant 0 : index
    %5 = vector.load %arg2[%c0_1, %c0_2] : memref<384x128xbf16, #tpu.memory_space<vmem>>, vector<384x128xbf16>
    %cst = arith.constant dense<0.000000e+00> : vector<32x128xf32>
    %6 = tpu.matmul %4, %5, %cst {dimension_numbers = #tpu.dot_dimension_numbers<[1], [0], [0], [1], [0, 0, 1, 1], [], []>} : vector<32x384xbf16>, vector<384x128xbf16>, vector<32x128xf32> -> vector<32x128xf32>
    %c0_3 = arith.constant 0 : index
    %c0_4 = arith.constant 0 : index
    %7 = vector.load %arg3[%c0_3, %c0_4] : memref<1x128xf32, #tpu.memory_space<vmem>>, vector<1x128xf32>
    %8 = vector.broadcast %7 : vector<1x128xf32> to vector<32x128xf32>
    %9 = arith.addf %6, %8 : vector<32x128xf32>
    %cst_5 = arith.constant 0.000000e+00 : f32
    %10 = vector.broadcast %cst_5 : f32 to vector<32x128xf32>
    %11 = arith.maximumf %9, %10 : vector<32x128xf32>
    %c31_i32_6 = arith.constant 31 : i32
    %12 = tpu.dynamic_rotate %11 by %c31_i32_6 dim 0 : vector<32x128xf32>, i32 -> vector<32x128xf32>
    %c30_i32_7 = arith.constant 30 : i32
    %13 = tpu.dynamic_rotate %11 by %c30_i32_7 dim 0 : vector<32x128xf32>, i32 -> vector<32x128xf32>
    %14 = tpu.concatenate %11, %12, %13 in 1 : vector<32x128xf32>, vector<32x128xf32>, vector<32x128xf32> -> vector<32x384xf32>
    %15 = arith.truncf %14 : vector<32x384xf32> to vector<32x384xbf16>
    %c0_8 = arith.constant 0 : index
    %c0_9 = arith.constant 0 : index
    %16 = vector.load %arg4[%c0_8, %c0_9] : memref<384x128xbf16, #tpu.memory_space<vmem>>, vector<384x128xbf16>
    %cst_10 = arith.constant dense<0.000000e+00> : vector<32x128xf32>
    %17 = tpu.matmul %15, %16, %cst_10 {dimension_numbers = #tpu.dot_dimension_numbers<[1], [0], [0], [1], [0, 0, 1, 1], [], []>} : vector<32x384xbf16>, vector<384x128xbf16>, vector<32x128xf32> -> vector<32x128xf32>
    %c0_11 = arith.constant 0 : index
    %c0_12 = arith.constant 0 : index
    %18 = vector.load %arg5[%c0_11, %c0_12] : memref<1x128xf32, #tpu.memory_space<vmem>>, vector<1x128xf32>
    %19 = vector.broadcast %18 : vector<1x128xf32> to vector<32x128xf32>
    %20 = arith.addf %17, %19 : vector<32x128xf32>
    %cst_13 = arith.constant 0.000000e+00 : f32
    %21 = vector.broadcast %cst_13 : f32 to vector<32x128xf32>
    %22 = arith.maximumf %20, %21 : vector<32x128xf32>
    %23 = arith.truncf %22 : vector<32x128xf32> to vector<32x128xbf16>
    %24 = vector.extract_strided_slice %23 {offsets = [0, 0], sizes = [12, 96], strides = [1, 1]} : vector<32x128xbf16> to vector<12x96xbf16>
    %c0_14 = arith.constant 0 : index
    %c0_15 = arith.constant 0 : index
    %c0_16 = arith.constant 0 : index
    %25 = vector.load %arg10[%c0_14, %c0_15, %c0_16] : memref<2x12x96xbf16, #tpu.memory_space<vmem>>, vector<1x12x96xbf16>
    %26 = vector.shape_cast %25 : vector<1x12x96xbf16> to vector<12x96xbf16>
    %27 = vector.shape_cast %24 : vector<12x96xbf16> to vector<1x12x96xbf16>
    tpu.vector_store %arg10[%c0_14, %c0_15, %c0_16], %27 {strides = array<i32>} : memref<2x12x96xbf16, #tpu.memory_space<vmem>>, vector<1x12x96xbf16>,
    %28 = vector.extract_strided_slice %23 {offsets = [16, 0], sizes = [12, 96], strides = [1, 1]} : vector<32x128xbf16> to vector<12x96xbf16>
    %c1 = arith.constant 1 : index
    %c0_17 = arith.constant 0 : index
    %c0_18 = arith.constant 0 : index
    %29 = vector.load %arg10[%c1, %c0_17, %c0_18] : memref<2x12x96xbf16, #tpu.memory_space<vmem>>, vector<1x12x96xbf16>
    %30 = vector.shape_cast %29 : vector<1x12x96xbf16> to vector<12x96xbf16>
    %31 = vector.shape_cast %28 : vector<12x96xbf16> to vector<1x12x96xbf16>
    tpu.vector_store %arg10[%c1, %c0_17, %c0_18], %31 {strides = array<i32>} : memref<2x12x96xbf16, #tpu.memory_space<vmem>>, vector<1x12x96xbf16>,
    %c0_19 = arith.constant 0 : index
    %c0_20 = arith.constant 0 : index
    %32 = vector.load %arg6[%c0_19, %c0_20] : memref<12x32xbf16, #tpu.memory_space<vmem>>, vector<12x32xbf16>
    %cst_21 = arith.constant dense<0.000000e+00> : vector<12x128xf32>
    %33 = tpu.matmul %32, %23, %cst_21 {dimension_numbers = #tpu.dot_dimension_numbers<[1], [0], [0], [1], [0, 0, 1, 1], [], []>} : vector<12x32xbf16>, vector<32x128xbf16>, vector<12x128xf32> -> vector<12x128xf32>
    %c0_22 = arith.constant 0 : index
    %c0_23 = arith.constant 0 : index
    %34 = vector.load %arg7[%c0_22, %c0_23] : memref<12x32xbf16, #tpu.memory_space<vmem>>, vector<12x32xbf16>
    %cst_24 = arith.constant dense<0.000000e+00> : vector<12x128xf32>
    %35 = tpu.matmul %34, %23, %cst_24 {dimension_numbers = #tpu.dot_dimension_numbers<[1], [0], [0], [1], [0, 0, 1, 1], [], []>} : vector<12x32xbf16>, vector<32x128xbf16>, vector<12x128xf32> -> vector<12x128xf32>
    %36 = arith.maximumf %33, %35 : vector<12x128xf32>
    %37 = arith.truncf %36 : vector<12x128xf32> to vector<12x128xbf16>
    %c0_25 = arith.constant 0 : index
    %c0_26 = arith.constant 0 : index
    %38 = vector.load %arg8[%c0_25, %c0_26] : memref<128x48xbf16, #tpu.memory_space<vmem>>, vector<128x48xbf16>
    %cst_27 = arith.constant dense<0.000000e+00> : vector<12x48xf32>
    %39 = tpu.matmul %37, %38, %cst_27 {dimension_numbers = #tpu.dot_dimension_numbers<[1], [0], [0], [1], [0, 0, 1, 1], [], []>} : vector<12x128xbf16>, vector<128x48xbf16>, vector<12x48xf32> -> vector<12x48xf32>
    %c0_28 = arith.constant 0 : index
    %c0_29 = arith.constant 0 : index
    %40 = vector.load %arg9[%c0_28, %c0_29] : memref<128x48xbf16, #tpu.memory_space<vmem>>, vector<128x48xbf16>
    %cst_30 = arith.constant dense<0.000000e+00> : vector<12x48xf32>
    %41 = tpu.matmul %37, %40, %cst_30 {dimension_numbers = #tpu.dot_dimension_numbers<[1], [0], [0], [1], [0, 0, 1, 1], [], []>} : vector<12x128xbf16>, vector<128x48xbf16>, vector<12x48xf32> -> vector<12x48xf32>
    %42 = arith.maximumf %39, %41 : vector<12x48xf32>
    %43 = vector.extract_strided_slice %42 {offsets = [0, 0], sizes = [6, 48], strides = [1, 1]} : vector<12x48xf32> to vector<6x48xf32>
    %c0_31 = arith.constant 0 : index
    %c0_32 = arith.constant 0 : index
    %c0_33 = arith.constant 0 : index
    %44 = vector.load %arg11[%c0_31, %c0_32, %c0_33] : memref<2x6x48xf32, #tpu.memory_space<vmem>>, vector<1x6x48xf32>
    %45 = vector.shape_cast %44 : vector<1x6x48xf32> to vector<6x48xf32>
    %46 = vector.shape_cast %43 : vector<6x48xf32> to vector<1x6x48xf32>
    tpu.vector_store %arg11[%c0_31, %c0_32, %c0_33], %46 {strides = array<i32>} : memref<2x6x48xf32, #tpu.memory_space<vmem>>, vector<1x6x48xf32>,
    %47 = vector.extract_strided_slice %42 {offsets = [6, 0], sizes = [6, 48], strides = [1, 1]} : vector<12x48xf32> to vector<6x48xf32>
    %c1_34 = arith.constant 1 : index
    %c0_35 = arith.constant 0 : index
    %c0_36 = arith.constant 0 : index
    %48 = vector.load %arg11[%c1_34, %c0_35, %c0_36] : memref<2x6x48xf32, #tpu.memory_space<vmem>>, vector<1x6x48xf32>
    %49 = vector.shape_cast %48 : vector<1x6x48xf32> to vector<6x48xf32>
    %50 = vector.shape_cast %47 : vector<6x48xf32> to vector<1x6x48xf32>
    tpu.vector_store %arg11[%c1_34, %c0_35, %c0_36], %50 {strides = array<i32>} : memref<2x6x48xf32, #tpu.memory_space<vmem>>, vector<1x6x48xf32>,
    return
  }
  func.func @transform_0(%arg0: i32) -> (i32, i32) {
    %c0_i32 = arith.constant 0 : i32
    %c0_i32_0 = arith.constant 0 : i32
    return %arg0, %c0_i32 : i32, i32
  }
  func.func @transform_1(%arg0: i32) -> (i32, i32) {
    %c0_i32 = arith.constant 0 : i32
    %c0_i32_0 = arith.constant 0 : i32
    %c0_i32_1 = arith.constant 0 : i32
    return %c0_i32, %c0_i32_0 : i32, i32
  }
  func.func @transform_2(%arg0: i32) -> (i32, i32) {
    %c0_i32 = arith.constant 0 : i32
    %c0_i32_0 = arith.constant 0 : i32
    %c0_i32_1 = arith.constant 0 : i32
    return %c0_i32, %c0_i32_0 : i32, i32
  }
  func.func @transform_3(%arg0: i32) -> (i32, i32) {
    %c0_i32 = arith.constant 0 : i32
    %c0_i32_0 = arith.constant 0 : i32
    %c0_i32_1 = arith.constant 0 : i32
    return %c0_i32, %c0_i32_0 : i32, i32
  }
  func.func @transform_4(%arg0: i32) -> (i32, i32) {
    %c0_i32 = arith.constant 0 : i32
    %c0_i32_0 = arith.constant 0 : i32
    %c0_i32_1 = arith.constant 0 : i32
    return %c0_i32, %c0_i32_0 : i32, i32
  }
  func.func @transform_5(%arg0: i32) -> (i32, i32) {
    %c0_i32 = arith.constant 0 : i32
    %c0_i32_0 = arith.constant 0 : i32
    %c0_i32_1 = arith.constant 0 : i32
    return %c0_i32, %c0_i32_0 : i32, i32
  }
  func.func @transform_6(%arg0: i32) -> (i32, i32) {
    %c0_i32 = arith.constant 0 : i32
    %c0_i32_0 = arith.constant 0 : i32
    %c0_i32_1 = arith.constant 0 : i32
    return %c0_i32, %c0_i32_0 : i32, i32
  }
  func.func @transform_7(%arg0: i32) -> (i32, i32) {
    %c0_i32 = arith.constant 0 : i32
    %c0_i32_0 = arith.constant 0 : i32
    %c0_i32_1 = arith.constant 0 : i32
    return %c0_i32, %c0_i32_0 : i32, i32
  }
  func.func @transform_8(%arg0: i32) -> (i32, i32) {
    %c0_i32 = arith.constant 0 : i32
    %c0_i32_0 = arith.constant 0 : i32
    %c0_i32_1 = arith.constant 0 : i32
    return %c0_i32, %c0_i32_0 : i32, i32
  }
  func.func @transform_9(%arg0: i32) -> (i32, i32, i32) {
    %c0_i32 = arith.constant 0 : i32
    %c0_i32_0 = arith.constant 0 : i32
    %c0_i32_1 = arith.constant 0 : i32
    return %arg0, %c0_i32, %c0_i32_0 : i32, i32, i32
  }
  func.func @transform_10(%arg0: i32) -> (i32, i32, i32) {
    %c0_i32 = arith.constant 0 : i32
    %c0_i32_0 = arith.constant 0 : i32
    %c0_i32_1 = arith.constant 0 : i32
    return %arg0, %c0_i32, %c0_i32_0 : i32, i32, i32
  }
}

</mosaic_0001>

<llo_original>
// kernel: tile.18
$region0: #{tile.18}
  #allocation0 [shape = 's32[1]{0}', space=sflag, size = 0x4, scoped, tag = 'scoped memory for tile.18']
  %s0 = inlined_call_operand.vmem [shape: f32[8], index: 0, kind: input, shape index: {}]
  %s1 = inlined_call_operand.vmem [shape: f32[12,8], index: 1, kind: output, shape index: {}]
  // Predicated region
  $region2: #{tile.18} parent=0 // pred_check
    _
  $region3: #{tile.18} parent=0 // pred_check_branch
    %3 = sbr.rel (0) target = $region5
  $region4: #{tile.18} parent=0 // pred_region
    _
  $region5: #{tile.18} parent=0 // pred_fallthru
    _
  %v4 = vld [vmem:[%s0] ss:$0 sm:$0xff]
  %5 = vst [vmem:[%s1] sm:$0xff] %v4
  %s6 = scalar_lea.vmem %s1, 8
  %7 = vst [vmem:[%s6] sm:$0xff] %v4

// kernel: tile.19
$region0: #{tile.19}
  %s0 = inlined_call_operand.vmem [shape: f32[12,8], index: 0, kind: input, shape index: {}]
  %s1 = inlined_call_operand.vmem [shape: f32[96], index: 1, kind: output, shape index: {}]
  $region1: #{tile.19} parent=0
    #allocation0 [shape = 'u8[4096]{0}', space=vmem, size = 0x1000, scoped, tag = 'scoped mem for output reshape']
    %v2 = vld [vmem:[%s0] sm:$0x1]
    %vm3 = vcmask 64512
    %4 = vst.msk [vmem:[#allocation0] sm:$0x1] %vm3, %v2
    %s5 = scalar_lea.vmem %s0, 11
    %v6 = vld [vmem:[%s5] sm:$0x1]
    %7 = vrot.lane.b32.xlu0 %v6, 88
    %v8 = vpop.permute.xlu0 %7
    %vm9 = vcmask 786112
    %10 = vst.msk [vmem:[#allocation0] sm:$0x1] %vm9, %v8
    %s11 = scalar_lea.vmem %s0, 10
    %v12 = vld [vmem:[%s11] sm:$0x1]
    %13 = vrot.lane.b32.xlu0 %v12, 80
    %v14 = vpop.permute.xlu0 %13
    %vm15 = vcmask 720512
    %16 = vst.msk [vmem:[#allocation0] sm:$0x1] %vm15, %v14
    %s17 = scalar_lea.vmem %s0, 9
    %v18 = vld [vmem:[%s17] sm:$0x1]
    %19 = vrot.lane.b32.xlu0 %v18, 72
    %v20 = vpop.permute.xlu0 %19
    %vm21 = vcmask 654912
    %22 = vst.msk [vmem:[#allocation0] sm:$0x1] %vm21, %v20
    %s23 = scalar_lea.vmem %s0, 8
    %v24 = vld [vmem:[%s23] sm:$0x1]
    %25 = vrot.lane.b32.xlu0 %v24, 64
    %v26 = vpop.permute.xlu0 %25
    %vm27 = vcmask 589312
    %28 = vst.msk [vmem:[#allocation0] sm:$0x1] %vm27, %v26
    %s29 = scalar_lea.vmem %s0, 7
    %v30 = vld [vmem:[%s29] sm:$0x1]
    %31 = vrot.lane.b32.xlu0 %v30, 56
    %v32 = vpop.permute.xlu0 %31
    %vm33 = vcmask 523712
    %34 = vst.msk [vmem:[#allocation0] sm:$0x1] %vm33, %v32
    %s35 = scalar_lea.vmem %s0, 6
    %v36 = vld [vmem:[%s35] sm:$0x1]
    %37 = vrot.lane.b32.xlu0 %v36, 48
    %v38 = vpop.permute.xlu0 %37
    %vm39 = vcmask 458112
    %40 = vst.msk [vmem:[#allocation0] sm:$0x1] %vm39, %v38
    %s41 = scalar_lea.vmem %s0, 5
    %v42 = vld [vmem:[%s41] sm:$0x1]
    %43 = vrot.lane.b32.xlu0 %v42, 40
    %v44 = vpop.permute.xlu0 %43
    %vm45 = vcmask 392512
    %46 = vst.msk [vmem:[#allocation0] sm:$0x1] %vm45, %v44
    %s47 = scalar_lea.vmem %s0, 4
    %v48 = vld [vmem:[%s47] sm:$0x1]
    %49 = vrot.lane.b32.xlu0 %v48, 32
    %v50 = vpop.permute.xlu0 %49
    %vm51 = vcmask 326912
    %52 = vst.msk [vmem:[#allocation0] sm:$0x1] %vm51, %v50
    %s53 = scalar_lea.vmem %s0, 3
    %v54 = vld [vmem:[%s53] sm:$0x1]
    %55 = vrot.lane.b32.xlu0 %v54, 24
    %v56 = vpop.permute.xlu0 %55
    %vm57 = vcmask 261312
    %58 = vst.msk [vmem:[#allocation0] sm:$0x1] %vm57, %v56
    %s59 = scalar_lea.vmem %s0, 2
    %v60 = vld [vmem:[%s59] sm:$0x1]
    %61 = vrot.lane.b32.xlu0 %v60, 16
    %v62 = vpop.permute.xlu0 %61
    %vm63 = vcmask 195712
    %64 = vst.msk [vmem:[#allocation0] sm:$0x1] %vm63, %v62
    %s65 = scalar_lea.vmem %s0, 1
    %v66 = vld [vmem:[%s65] sm:$0x1]
    %67 = vrot.lane.b32.xlu0 %v66, 8
    %v68 = vpop.permute.xlu0 %67
    %vm69 = vcmask 130112
    %70 = vst.msk [vmem:[#allocation0] sm:$0x1] %vm69, %v68
    %s72 = ssub.s32 2, 1
    %v73 = vld [vmem:[#allocation0] sm:%s72]
    %s75 = ssub.s32 2, 1
    %76 = vst [vmem:[%s1] sm:%s75] %v73

// kernel: tile.13
$region0: #{tile.13}
  #allocation0 [shape = 's32[1]{0}', space=sflag, size = 0x4, scoped, tag = 'scoped memory for tile.13']
  %s0 = inlined_call_operand.vmem [shape: f32[8], index: 0, kind: input, shape index: {}]
  %s1 = inlined_call_operand.vmem [shape: f32[14,8], index: 1, kind: output, shape index: {}]
  // Predicated region
  $region2: #{tile.13} parent=0 // pred_check
    _
  $region3: #{tile.13} parent=0 // pred_check_branch
    %3 = sbr.rel (0) target = $region5
  $region4: #{tile.13} parent=0 // pred_region
    _
  $region5: #{tile.13} parent=0 // pred_fallthru
    _
  %v4 = vld [vmem:[%s0] ss:$0 sm:$0xff]
  %5 = vst [vmem:[%s1] sm:$0xff] %v4
  %s6 = scalar_lea.vmem %s1, 8
  %7 = vst [vmem:[%s6] sm:$0xff] %v4

// kernel: tile.14
$region0: #{tile.14}
  %s0 = inlined_call_operand.vmem [shape: f32[14,8], index: 0, kind: input, shape index: {}]
  %s1 = inlined_call_operand.vmem [shape: f32[112], index: 1, kind: output, shape index: {}]
  $region1: #{tile.14} parent=0
    #allocation0 [shape = 'u8[4096]{0}', space=vmem, size = 0x1000, scoped, tag = 'scoped mem for output reshape']
    %v2 = vld [vmem:[%s0] sm:$0x1]
    %vm3 = vcmask 64512
    %4 = vst.msk [vmem:[#allocation0] sm:$0x1] %vm3, %v2
    %s5 = scalar_lea.vmem %s0, 13
    %v6 = vld [vmem:[%s5] sm:$0x1]
    %7 = vrot.lane.b32.xlu0 %v6, 104
    %v8 = vpop.permute.xlu0 %7
    %vm9 = vcmask 917312
    %10 = vst.msk [vmem:[#allocation0] sm:$0x1] %vm9, %v8
    %s11 = scalar_lea.vmem %s0, 12
    %v12 = vld [vmem:[%s11] sm:$0x1]
    %13 = vrot.lane.b32.xlu0 %v12, 96
    %v14 = vpop.permute.xlu0 %13
    %vm15 = vcmask 851712
    %16 = vst.msk [vmem:[#allocation0] sm:$0x1] %vm15, %v14
    %s17 = scalar_lea.vmem %s0, 11
    %v18 = vld [vmem:[%s17] sm:$0x1]
    %19 = vrot.lane.b32.xlu0 %v18, 88
    %v20 = vpop.permute.xlu0 %19
    %vm21 = vcmask 786112
    %22 = vst.msk [vmem:[#allocation0] sm:$0x1] %vm21, %v20
    %s23 = scalar_lea.vmem %s0, 10
    %v24 = vld [vmem:[%s23] sm:$0x1]
    %25 = vrot.lane.b32.xlu0 %v24, 80
    %v26 = vpop.permute.xlu0 %25
    %vm27 = vcmask 720512
    %28 = vst.msk [vmem:[#allocation0] sm:$0x1] %vm27, %v26
    %s29 = scalar_lea.vmem %s0, 9
    %v30 = vld [vmem:[%s29] sm:$0x1]
    %31 = vrot.lane.b32.xlu0 %v30, 72
    %v32 = vpop.permute.xlu0 %31
    %vm33 = vcmask 654912
    %34 = vst.msk [vmem:[#allocation0] sm:$0x1] %vm33, %v32
    %s35 = scalar_lea.vmem %s0, 8
    %v36 = vld [vmem:[%s35] sm:$0x1]
    %37 = vrot.lane.b32.xlu0 %v36, 64
    %v38 = vpop.permute.xlu0 %37
    %vm39 = vcmask 589312
    %40 = vst.msk [vmem:[#allocation0] sm:$0x1] %vm39, %v38
    %s41 = scalar_lea.vmem %s0, 7
    %v42 = vld [vmem:[%s41] sm:$0x1]
    %43 = vrot.lane.b32.xlu0 %v42, 56
    %v44 = vpop.permute.xlu0 %43
    %vm45 = vcmask 523712
    %46 = vst.msk [vmem:[#allocation0] sm:$0x1] %vm45, %v44
    %s47 = scalar_lea.vmem %s0, 6
    %v48 = vld [vmem:[%s47] sm:$0x1]
    %49 = vrot.lane.b32.xlu0 %v48, 48
    %v50 = vpop.permute.xlu0 %49
    %vm51 = vcmask 458112
    %52 = vst.msk [vmem:[#allocation0] sm:$0x1] %vm51, %v50
    %s53 = scalar_lea.vmem %s0, 5
    %v54 = vld [vmem:[%s53] sm:$0x1]
    %55 = vrot.lane.b32.xlu0 %v54, 40
    %v56 = vpop.permute.xlu0 %55
    %vm57 = vcmask 392512
    %58 = vst.msk [vmem:[#allocation0] sm:$0x1] %vm57, %v56
    %s59 = scalar_lea.vmem %s0, 4
    %v60 = vld [vmem:[%s59] sm:$0x1]
    %61 = vrot.lane.b32.xlu0 %v60, 32
    %v62 = vpop.permute.xlu0 %61
    %vm63 = vcmask 326912
    %64 = vst.msk [vmem:[#allocation0] sm:$0x1] %vm63, %v62
    %s65 = scalar_lea.vmem %s0, 3
    %v66 = vld [vmem:[%s65] sm:$0x1]
    %67 = vrot.lane.b32.xlu0 %v66, 24
    %v68 = vpop.permute.xlu0 %67
    %vm69 = vcmask 261312
    %70 = vst.msk [vmem:[#allocation0] sm:$0x1] %vm69, %v68
    %s71 = scalar_lea.vmem %s0, 2
    %v72 = vld [vmem:[%s71] sm:$0x1]
    %73 = vrot.lane.b32.xlu0 %v72, 16
    %v74 = vpop.permute.xlu0 %73
    %vm75 = vcmask 195712
    %76 = vst.msk [vmem:[#allocation0] sm:$0x1] %vm75, %v74
    %s77 = scalar_lea.vmem %s0, 1
    %v78 = vld [vmem:[%s77] sm:$0x1]
    %79 = vrot.lane.b32.xlu0 %v78, 8
    %v80 = vpop.permute.xlu0 %79
    %vm81 = vcmask 130112
    %82 = vst.msk [vmem:[#allocation0] sm:$0x1] %vm81, %v80
    %s84 = ssub.s32 2, 1
    %v85 = vld [vmem:[#allocation0] sm:%s84]
    %s87 = ssub.s32 2, 1
    %88 = vst [vmem:[%s1] sm:%s87] %v85

// kernel: stack_encoder_forward.1
$region0: #{stack_encoder_forward.1}
  #allocation0 [shape = 'u32[]', space=smem, size = 0x4, offset = 0x4, fixed_abs, tag = 'smem constant byte address 0x4 - core index']
  #allocation1 [shape = 'u32[72,128]{1,0:T(1,128)}', space=vmem, size = 0x9000, scoped, tag = 'internal scratch']
  %s0 = inlined_call_operand.vmem [shape: f32[32,128], index: 0, kind: input, shape index: {}]
  %s1 = inlined_call_operand.vmem [shape: bf16[384,128], index: 1, kind: input, shape index: {}]
  %s2 = inlined_call_operand.vmem [shape: f32[1,128], index: 2, kind: input, shape index: {}]
  %s3 = inlined_call_operand.vmem [shape: bf16[384,128], index: 3, kind: input, shape index: {}]
  %s4 = inlined_call_operand.vmem [shape: f32[1,128], index: 4, kind: input, shape index: {}]
  %s5 = inlined_call_operand.vmem [shape: bf16[12,32], index: 5, kind: input, shape index: {}]
  %s6 = inlined_call_operand.vmem [shape: bf16[12,32], index: 6, kind: input, shape index: {}]
  %s7 = inlined_call_operand.vmem [shape: bf16[128,48], index: 7, kind: input, shape index: {}]
  %s8 = inlined_call_operand.vmem [shape: bf16[128,48], index: 8, kind: input, shape index: {}]
  %s9 = inlined_call_operand.vmem [shape: bf16[2,12,96], index: 9, kind: output, shape index: {0}]
  %s10 = inlined_call_operand.vmem [shape: f32[2,6,48], index: 10, kind: output, shape index: {1}]
  %11 = xla_tuple %s9, %s10
  %s12 = sld [smem:[#allocation0]]
  $region54: #{stack_encoder_forward.1} parent=0
    _
  %s14 = ssub.s32 1, %s12
  %s15 = scalar_select 0, %s14, %s12
  // Predicated region
  $region2: #{stack_encoder_forward.1} parent=0 // pred_check
    _
  $region3: #{stack_encoder_forward.1} parent=0 // pred_check_branch
    %17 = sbr.rel (0) target = $region5
  $region4: #{stack_encoder_forward.1} parent=0 // pred_region
    _
  $region5: #{stack_encoder_forward.1} parent=0 // pred_fallthru
    _
  // Predicated region
  $region6: #{stack_encoder_forward.1} parent=0 // pred_check
    _
  $region7: #{stack_encoder_forward.1} parent=0 // pred_check_branch
    %19 = sbr.rel (0) target = $region9
  $region8: #{stack_encoder_forward.1} parent=0 // pred_region
    _
  $region9: #{stack_encoder_forward.1} parent=0 // pred_fallthru
    _
  // Predicated region
  $region10: #{stack_encoder_forward.1} parent=0 // pred_check
    _
  $region11: #{stack_encoder_forward.1} parent=0 // pred_check_branch
    %21 = sbr.rel (0) target = $region13
  $region12: #{stack_encoder_forward.1} parent=0 // pred_region
    _
  $region13: #{stack_encoder_forward.1} parent=0 // pred_fallthru
    _
  // Predicated region
  $region14: #{stack_encoder_forward.1} parent=0 // pred_check
    _
  $region15: #{stack_encoder_forward.1} parent=0 // pred_check_branch
    %23 = sbr.rel (0) target = $region17
  $region16: #{stack_encoder_forward.1} parent=0 // pred_region
    _
  $region17: #{stack_encoder_forward.1} parent=0 // pred_fallthru
    _
  // Predicated region
  $region18: #{stack_encoder_forward.1} parent=0 // pred_check
    _
  $region19: #{stack_encoder_forward.1} parent=0 // pred_check_branch
    %25 = sbr.rel (0) target = $region21
  $region20: #{stack_encoder_forward.1} parent=0 // pred_region
    _
  $region21: #{stack_encoder_forward.1} parent=0 // pred_fallthru
    _
  // Predicated region
  $region22: #{stack_encoder_forward.1} parent=0 // pred_check
    _
  $region23: #{stack_encoder_forward.1} parent=0 // pred_check_branch
    %27 = sbr.rel (0) target = $region25
  $region24: #{stack_encoder_forward.1} parent=0 // pred_region
    _
  $region25: #{stack_encoder_forward.1} parent=0 // pred_fallthru
    _
  // Predicated region
  $region26: #{stack_encoder_forward.1} parent=0 // pred_check
    _
  $region27: #{stack_encoder_forward.1} parent=0 // pred_check_branch
    %29 = sbr.rel (0) target = $region29
  $region28: #{stack_encoder_forward.1} parent=0 // pred_region
    _
  $region29: #{stack_encoder_forward.1} parent=0 // pred_fallthru
    _
  // Predicated region
  $region30: #{stack_encoder_forward.1} parent=0 // pred_check
    _
  $region31: #{stack_encoder_forward.1} parent=0 // pred_check_branch
    %31 = sbr.rel (0) target = $region33
  $region32: #{stack_encoder_forward.1} parent=0 // pred_region
    _
  $region33: #{stack_encoder_forward.1} parent=0 // pred_fallthru
    _
  // Predicated region
  $region34: #{stack_encoder_forward.1} parent=0 // pred_check
    _
  $region35: #{stack_encoder_forward.1} parent=0 // pred_check_branch
    %33 = sbr.rel (0) target = $region37
  $region36: #{stack_encoder_forward.1} parent=0 // pred_region
    _
  $region37: #{stack_encoder_forward.1} parent=0 // pred_fallthru
    _
  %v35 = vld [vmem:[%s0] sm:$0xff]
  %v36 = vld [vmem:[%s0 + $0x8] sm:$0xff]
  %v37 = vld [vmem:[%s0 + $0x10] sm:$0xff]
  %v38 = vld [vmem:[%s0 + $0x18] sm:$0xff]
  %v39 = vrot.slane %v35, 1
  %v40 = vrot.slane %v36, 1
  %v41 = vrot.slane %v37, 1
  %v42 = vrot.slane %v38, 1
  %v43 = vlaneseq
  %v44 = vshrl.u32 %v43, 7
  %vm45 = vcmp.lt.s32.totalorder %v44, 7
  %v46 = vsel %vm45, %v41, %v42
  %v47 = vsel %vm45, %v40, %v41
  %v48 = vsel %vm45, %v39, %v40
  %v49 = vsel %vm45, %v42, %v39
  %v50 = vrot.slane %v35, 2
  %v51 = vrot.slane %v36, 2
  %v52 = vrot.slane %v37, 2
  %v53 = vrot.slane %v38, 2
  %vm54 = vcmp.lt.s32.totalorder %v44, 6
  %v55 = vsel %vm54, %v52, %v53
  %v56 = vsel %vm54, %v51, %v52
  %v57 = vsel %vm54, %v50, %v51
  %v58 = vsel %vm54, %v53, %v50
  %v59 = vpack.c.bf16 %v36, %v35
  %v60 = vpack.c.bf16 %v47, %v48
  %v61 = vpack.c.bf16 %v56, %v57
  %v62 = vpack.c.bf16 %v38, %v37
  %v63 = vpack.c.bf16 %v49, %v46
  %v64 = vpack.c.bf16 %v58, %v55
  %v65 = vld [vmem:[%s1] sm:$0xf]
  %v66 = vld [vmem:[%s1 + $0x4] sm:$0xf]
  %v67 = vld [vmem:[%s1 + $0x8] sm:$0xf]
  %v68 = vld [vmem:[%s1 + $0xc] sm:$0xf]
  %v69 = vld [vmem:[%s1 + $0x10] sm:$0xf]
  %v70 = vld [vmem:[%s1 + $0x14] sm:$0xf]
  %v71 = vld [vmem:[%s1 + $0x18] sm:$0xf]
  %v72 = vld [vmem:[%s1 + $0x1c] sm:$0xf]
  %v73 = vld [vmem:[%s1 + $0x20] sm:$0xf]
  %v74 = vld [vmem:[%s1 + $0x24] sm:$0xf]
  %v75 = vld [vmem:[%s1 + $0x28] sm:$0xf]
  %v76 = vld [vmem:[%s1 + $0x2c] sm:$0xf]
  %v77 = vld [vmem:[%s1 + $0x30] sm:$0xf]
  %v78 = vld [vmem:[%s1 + $0x34] sm:$0xf]
  %v79 = vld [vmem:[%s1 + $0x38] sm:$0xf]
  %v80 = vld [vmem:[%s1 + $0x3c] sm:$0xf]
  %v81 = vld [vmem:[%s1 + $0x40] sm:$0xf]
  %v82 = vld [vmem:[%s1 + $0x44] sm:$0xf]
  %v83 = vld [vmem:[%s1 + $0x48] sm:$0xf]
  %v84 = vld [vmem:[%s1 + $0x4c] sm:$0xf]
  %v85 = vld [vmem:[%s1 + $0x50] sm:$0xf]
  %v86 = vld [vmem:[%s1 + $0x54] sm:$0xf]
  %v87 = vld [vmem:[%s1 + $0x58] sm:$0xf]
  %v88 = vld [vmem:[%s1 + $0x5c] sm:$0xf]
  %v89 = vld [vmem:[%s1 + $0x60] sm:$0xf]
  %v90 = vld [vmem:[%s1 + $0x64] sm:$0xf]
  %v91 = vld [vmem:[%s1 + $0x68] sm:$0xf]
  %v92 = vld [vmem:[%s1 + $0x6c] sm:$0xf]
  %v93 = vld [vmem:[%s1 + $0x70] sm:$0xf]
  %v94 = vld [vmem:[%s1 + $0x74] sm:$0xf]
  %v95 = vld [vmem:[%s1 + $0x78] sm:$0xf]
  %v96 = vld [vmem:[%s1 + $0x7c] sm:$0xf]
  %v97 = vld [vmem:[%s1 + $0x80] sm:$0xf]
  %v98 = vld [vmem:[%s1 + $0x84] sm:$0xf]
  %v99 = vld [vmem:[%s1 + $0x88] sm:$0xf]
  %v100 = vld [vmem:[%s1 + $0x8c] sm:$0xf]
  %v101 = vld [vmem:[%s1 + $0x90] sm:$0xf]
  %v102 = vld [vmem:[%s1 + $0x94] sm:$0xf]
  %v103 = vld [vmem:[%s1 + $0x98] sm:$0xf]
  %v104 = vld [vmem:[%s1 + $0x9c] sm:$0xf]
  %v105 = vld [vmem:[%s1 + $0xa0] sm:$0xf]
  %v106 = vld [vmem:[%s1 + $0xa4] sm:$0xf]
  %v107 = vld [vmem:[%s1 + $0xa8] sm:$0xf]
  %v108 = vld [vmem:[%s1 + $0xac] sm:$0xf]
  %v109 = vld [vmem:[%s1 + $0xb0] sm:$0xf]
  %v110 = vld [vmem:[%s1 + $0xb4] sm:$0xf]
  %v111 = vld [vmem:[%s1 + $0xb8] sm:$0xf]
  %v112 = vld [vmem:[%s1 + $0xbc] sm:$0xf]
  %v113 = vld [vmem:[%s2] sm:$0x1]
  %v115 = vperm.slane %v113, 0
  %v165 = vunpack.c.l.b16 %v65
  %v166 = vunpack.c.l.b16 %v66
  %v167 = vunpack.c.l.b16 %v67
  %v168 = vunpack.c.l.b16 %v68
  %v169 = vunpack.c.l.b16 %v69
  %v170 = vunpack.c.l.b16 %v70
  %v171 = vunpack.c.l.b16 %v71
  %v172 = vunpack.c.l.b16 %v72
  %v173 = vunpack.c.l.b16 %v73
  %v174 = vunpack.c.l.b16 %v74
  %v175 = vunpack.c.l.b16 %v75
  %v176 = vunpack.c.l.b16 %v76
  %v177 = vunpack.c.l.b16 %v77
  %v178 = vunpack.c.l.b16 %v78
  %v179 = vunpack.c.l.b16 %v79
  %v180 = vunpack.c.l.b16 %v80
  %v181 = vunpack.c.l.b16 %v81
  %v182 = vunpack.c.l.b16 %v82
  %v183 = vunpack.c.l.b16 %v83
  %v184 = vunpack.c.l.b16 %v84
  %v185 = vunpack.c.l.b16 %v85
  %v186 = vunpack.c.l.b16 %v86
  %v187 = vunpack.c.l.b16 %v87
  %v188 = vunpack.c.l.b16 %v88
  %v189 = vunpack.c.l.b16 %v89
  %v190 = vunpack.c.l.b16 %v90
  %v191 = vunpack.c.l.b16 %v91
  %v192 = vunpack.c.l.b16 %v92
  %v193 = vunpack.c.l.b16 %v93
  %v194 = vunpack.c.l.b16 %v94
  %v195 = vunpack.c.l.b16 %v95
  %v196 = vunpack.c.l.b16 %v96
  %v197 = vunpack.c.l.b16 %v97
  %v198 = vunpack.c.l.b16 %v98
  %v199 = vunpack.c.l.b16 %v99
  %v200 = vunpack.c.l.b16 %v100
  %v201 = vunpack.c.l.b16 %v101
  %v202 = vunpack.c.l.b16 %v102
  %v203 = vunpack.c.l.b16 %v103
  %v204 = vunpack.c.l.b16 %v104
  %v205 = vunpack.c.l.b16 %v105
  %v206 = vunpack.c.l.b16 %v106
  %v207 = vunpack.c.l.b16 %v107
  %v208 = vunpack.c.l.b16 %v108
  %v209 = vunpack.c.l.b16 %v109
  %v210 = vunpack.c.l.b16 %v110
  %v211 = vunpack.c.l.b16 %v111
  %v212 = vunpack.c.l.b16 %v112
  %v213 = vpack.c.b16 %v166, %v165
  %v214 = vpack.c.b16 %v168, %v167
  %v215 = vpack.c.b16 %v170, %v169
  %v216 = vpack.c.b16 %v172, %v171
  %v217 = vpack.c.b16 %v174, %v173
  %v218 = vpack.c.b16 %v176, %v175
  %v219 = vpack.c.b16 %v178, %v177
  %v220 = vpack.c.b16 %v180, %v179
  %v221 = vpack.c.b16 %v182, %v181
  %v222 = vpack.c.b16 %v184, %v183
  %v223 = vpack.c.b16 %v186, %v185
  %v224 = vpack.c.b16 %v188, %v187
  %v225 = vpack.c.b16 %v190, %v189
  %v226 = vpack.c.b16 %v192, %v191
  %v227 = vpack.c.b16 %v194, %v193
  %v228 = vpack.c.b16 %v196, %v195
  %v229 = vpack.c.b16 %v198, %v197
  %v230 = vpack.c.b16 %v200, %v199
  %v231 = vpack.c.b16 %v202, %v201
  %v232 = vpack.c.b16 %v204, %v203
  %v233 = vpack.c.b16 %v206, %v205
  %v234 = vpack.c.b16 %v208, %v207
  %v235 = vpack.c.b16 %v210, %v209
  %v236 = vpack.c.b16 %v212, %v211
  %261 = vmatpush.bf16.msra.mxu0 %v220
  %262 = vmatpush.bf16.msra.mxu0 %v219
  %263 = vmatpush.bf16.msra.mxu0 %v218
  %264 = vmatpush.bf16.msra.mxu0 %v217
  %265 = vmatpush.bf16.msra.mxu0 %v216
  %266 = vmatpush.bf16.msra.mxu0 %v215
  %267 = vmatpush.bf16.msra.mxu0 %v214
  %268 = vmatpush.bf16.msra.mxu0 %v213
  %269 = vmatmul.bf16.gmra.mxu0 %v59
  %v270 = vpop.f32.mrf.mxu0
  %v271 = vadd.f32 %v115, %v270
  %v272 = vpop.f32.mrf.mxu0
  %v273 = vadd.f32 %v115, %v272
  %274 = vmatmul.bf16.gmra.mxu0 %v62
  %v275 = vpop.f32.mrf.mxu0
  %v276 = vadd.f32 %v115, %v275
  %v277 = vpop.f32.mrf.mxu0
  %v278 = vadd.f32 %v115, %v277
  %279 = vdwg.mxu0
  %280 = vmatpush.bf16.msra.mxu0 %v228
  %281 = vmatpush.bf16.msra.mxu0 %v227
  %282 = vmatpush.bf16.msra.mxu0 %v226
  %283 = vmatpush.bf16.msra.mxu0 %v225
  %284 = vmatpush.bf16.msra.mxu0 %v224
  %285 = vmatpush.bf16.msra.mxu0 %v223
  %286 = vmatpush.bf16.msra.mxu0 %v222
  %287 = vmatpush.bf16.msra.mxu0 %v221
  %288 = vmatmul.bf16.gmra.mxu0 %v60
  %v289 = vpop.f32.mrf.mxu0
  %v290 = vadd.f32 %v271, %v289
  %v291 = vpop.f32.mrf.mxu0
  %v292 = vadd.f32 %v273, %v291
  %293 = vmatmul.bf16.gmra.mxu0 %v63
  %v294 = vpop.f32.mrf.mxu0
  %v295 = vadd.f32 %v276, %v294
  %v296 = vpop.f32.mrf.mxu0
  %v297 = vadd.f32 %v278, %v296
  %298 = vdwg.mxu0
  %299 = vmatpush.bf16.msra.mxu0 %v236
  %300 = vmatpush.bf16.msra.mxu0 %v235
  %301 = vmatpush.bf16.msra.mxu0 %v234
  %302 = vmatpush.bf16.msra.mxu0 %v233
  %303 = vmatpush.bf16.msra.mxu0 %v232
  %304 = vmatpush.bf16.msra.mxu0 %v231
  %305 = vmatpush.bf16.msra.mxu0 %v230
  %306 = vmatpush.bf16.msra.mxu0 %v229
  %307 = vmatmul.bf16.gmra.mxu0 %v61
  %v308 = vpop.f32.mrf.mxu0
  %v309 = vadd.f32 %v290, %v308
  %v310 = vpop.f32.mrf.mxu0
  %v311 = vadd.f32 %v292, %v310
  %312 = vmatmul.bf16.gmra.mxu0 %v64
  %v313 = vpop.f32.mrf.mxu0
  %v314 = vadd.f32 %v295, %v313
  %v315 = vpop.f32.mrf.mxu0
  %v316 = vadd.f32 %v297, %v315
  %317 = vdwg.mxu0
  %v318 = vmax.f32 %v309, 0.0
  %v319 = vmax.f32 %v311, 0.0
  %v320 = vmax.f32 %v314, 0.0
  %v321 = vmax.f32 %v316, 0.0
  %v322 = vrot.slane %v318, 1
  %v323 = vrot.slane %v319, 1
  %v324 = vrot.slane %v320, 1
  %v325 = vrot.slane %v321, 1
  %v326 = vsel %vm45, %v324, %v325
  %v327 = vsel %vm45, %v323, %v324
  %v328 = vsel %vm45, %v322, %v323
  %v329 = vsel %vm45, %v325, %v322
  %v330 = vrot.slane %v318, 2
  %v331 = vrot.slane %v319, 2
  %v332 = vrot.slane %v320, 2
  %v333 = vrot.slane %v321, 2
  %v334 = vsel %vm54, %v332, %v333
  %v335 = vsel %vm54, %v331, %v332
  %v336 = vsel %vm54, %v330, %v331
  %v337 = vsel %vm54, %v333, %v330
  %v338 = vpack.c.bf16 %v319, %v318
  %v339 = vpack.c.bf16 %v327, %v328
  %v340 = vpack.c.bf16 %v335, %v336
  %v341 = vpack.c.bf16 %v321, %v320
  %v342 = vpack.c.bf16 %v329, %v326
  %v343 = vpack.c.bf16 %v337, %v334
  %v344 = vld [vmem:[%s3] sm:$0xf]
  %v345 = vld [vmem:[%s3 + $0x4] sm:$0xf]
  %v346 = vld [vmem:[%s3 + $0x8] sm:$0xf]
  %v347 = vld [vmem:[%s3 + $0xc] sm:$0xf]
  %v348 = vld [vmem:[%s3 + $0x10] sm:$0xf]
  %v349 = vld [vmem:[%s3 + $0x14] sm:$0xf]
  %v350 = vld [vmem:[%s3 + $0x18] sm:$0xf]
  %v351 = vld [vmem:[%s3 + $0x1c] sm:$0xf]
  %v352 = vld [vmem:[%s3 + $0x20] sm:$0xf]
  %v353 = vld [vmem:[%s3 + $0x24] sm:$0xf]
  %v354 = vld [vmem:[%s3 + $0x28] sm:$0xf]
  %v355 = vld [vmem:[%s3 + $0x2c] sm:$0xf]
  %v356 = vld [vmem:[%s3 + $0x30] sm:$0xf]
  %v357 = vld [vmem:[%s3 + $0x34] sm:$0xf]
  %v358 = vld [vmem:[%s3 + $0x38] sm:$0xf]
  %v359 = vld [vmem:[%s3 + $0x3c] sm:$0xf]
  %v360 = vld [vmem:[%s3 + $0x40] sm:$0xf]
  %v361 = vld [vmem:[%s3 + $0x44] sm:$0xf]
  %v362 = vld [vmem:[%s3 + $0x48] sm:$0xf]
  %v363 = vld [vmem:[%s3 + $0x4c] sm:$0xf]
  %v364 = vld [vmem:[%s3 + $0x50] sm:$0xf]
  %v365 = vld [vmem:[%s3 + $0x54] sm:$0xf]
  %v366 = vld [vmem:[%s3 + $0x58] sm:$0xf]
  %v367 = vld [vmem:[%s3 + $0x5c] sm:$0xf]
  %v368 = vld [vmem:[%s3 + $0x60] sm:$0xf]
  %v369 = vld [vmem:[%s3 + $0x64] sm:$0xf]
  %v370 = vld [vmem:[%s3 + $0x68] sm:$0xf]
  %v371 = vld [vmem:[%s3 + $0x6c] sm:$0xf]
  %v372 = vld [vmem:[%s3 + $0x70] sm:$0xf]
  %v373 = vld [vmem:[%s3 + $0x74] sm:$0xf]
  %v374 = vld [vmem:[%s3 + $0x78] sm:$0xf]
  %v375 = vld [vmem:[%s3 + $0x7c] sm:$0xf]
  %v376 = vld [vmem:[%s3 + $0x80] sm:$0xf]
  %v377 = vld [vmem:[%s3 + $0x84] sm:$0xf]
  %v378 = vld [vmem:[%s3 + $0x88] sm:$0xf]
  %v379 = vld [vmem:[%s3 + $0x8c] sm:$0xf]
  %v380 = vld [vmem:[%s3 + $0x90] sm:$0xf]
  %v381 = vld [vmem:[%s3 + $0x94] sm:$0xf]
  %v382 = vld [vmem:[%s3 + $0x98] sm:$0xf]
  %v383 = vld [vmem:[%s3 + $0x9c] sm:$0xf]
  %v384 = vld [vmem:[%s3 + $0xa0] sm:$0xf]
  %v385 = vld [vmem:[%s3 + $0xa4] sm:$0xf]
  %v386 = vld [vmem:[%s3 + $0xa8] sm:$0xf]
  %v387 = vld [vmem:[%s3 + $0xac] sm:$0xf]
  %v388 = vld [vmem:[%s3 + $0xb0] sm:$0xf]
  %v389 = vld [vmem:[%s3 + $0xb4] sm:$0xf]
  %v390 = vld [vmem:[%s3 + $0xb8] sm:$0xf]
  %v391 = vld [vmem:[%s3 + $0xbc] sm:$0xf]
  %v392 = vld [vmem:[%s4] sm:$0x1]
  %v394 = vperm.slane %v392, 0
  %v444 = vunpack.c.l.b16 %v344
  %v445 = vunpack.c.l.b16 %v345
  %v446 = vunpack.c.l.b16 %v346
  %v447 = vunpack.c.l.b16 %v347
  %v448 = vunpack.c.l.b16 %v348
  %v449 = vunpack.c.l.b16 %v349
  %v450 = vunpack.c.l.b16 %v350
  %v451 = vunpack.c.l.b16 %v351
  %v452 = vunpack.c.l.b16 %v352
  %v453 = vunpack.c.l.b16 %v353
  %v454 = vunpack.c.l.b16 %v354
  %v455 = vunpack.c.l.b16 %v355
  %v456 = vunpack.c.l.b16 %v356
  %v457 = vunpack.c.l.b16 %v357
  %v458 = vunpack.c.l.b16 %v358
  %v459 = vunpack.c.l.b16 %v359
  %v460 = vunpack.c.l.b16 %v360
  %v461 = vunpack.c.l.b16 %v361
  %v462 = vunpack.c.l.b16 %v362
  %v463 = vunpack.c.l.b16 %v363
  %v464 = vunpack.c.l.b16 %v364
  %v465 = vunpack.c.l.b16 %v365
  %v466 = vunpack.c.l.b16 %v366
  %v467 = vunpack.c.l.b16 %v367
  %v468 = vunpack.c.l.b16 %v368
  %v469 = vunpack.c.l.b16 %v369
  %v470 = vunpack.c.l.b16 %v370
  %v471 = vunpack.c.l.b16 %v371
  %v472 = vunpack.c.l.b16 %v372
  %v473 = vunpack.c.l.b16 %v373
  %v474 = vunpack.c.l.b16 %v374
  %v475 = vunpack.c.l.b16 %v375
  %v476 = vunpack.c.l.b16 %v376
  %v477 = vunpack.c.l.b16 %v377
  %v478 = vunpack.c.l.b16 %v378
  %v479 = vunpack.c.l.b16 %v379
  %v480 = vunpack.c.l.b16 %v380
  %v481 = vunpack.c.l.b16 %v381
  %v482 = vunpack.c.l.b16 %v382
  %v483 = vunpack.c.l.b16 %v383
  %v484 = vunpack.c.l.b16 %v384
  %v485 = vunpack.c.l.b16 %v385
  %v486 = vunpack.c.l.b16 %v386
  %v487 = vunpack.c.l.b16 %v387
  %v488 = vunpack.c.l.b16 %v388
  %v489 = vunpack.c.l.b16 %v389
  %v490 = vunpack.c.l.b16 %v390
  %v491 = vunpack.c.l.b16 %v391
  %v492 = vpack.c.b16 %v445, %v444
  %v493 = vpack.c.b16 %v447, %v446
  %v494 = vpack.c.b16 %v449, %v448
  %v495 = vpack.c.b16 %v451, %v450
  %v496 = vpack.c.b16 %v453, %v452
  %v497 = vpack.c.b16 %v455, %v454
  %v498 = vpack.c.b16 %v457, %v456
  %v499 = vpack.c.b16 %v459, %v458
  %v500 = vpack.c.b16 %v461, %v460
  %v501 = vpack.c.b16 %v463, %v462
  %v502 = vpack.c.b16 %v465, %v464
  %v503 = vpack.c.b16 %v467, %v466
  %v504 = vpack.c.b16 %v469, %v468
  %v505 = vpack.c.b16 %v471, %v470
  %v506 = vpack.c.b16 %v473, %v472
  %v507 = vpack.c.b16 %v475, %v474
  %v508 = vpack.c.b16 %v477, %v476
  %v509 = vpack.c.b16 %v479, %v478
  %v510 = vpack.c.b16 %v481, %v480
  %v511 = vpack.c.b16 %v483, %v482
  %v512 = vpack.c.b16 %v485, %v484
  %v513 = vpack.c.b16 %v487, %v486
  %v514 = vpack.c.b16 %v489, %v488
  %v515 = vpack.c.b16 %v491, %v490
  %540 = vmatpush.bf16.msra.mxu0 %v499
  %541 = vmatpush.bf16.msra.mxu0 %v498
  %542 = vmatpush.bf16.msra.mxu0 %v497
  %543 = vmatpush.bf16.msra.mxu0 %v496
  %544 = vmatpush.bf16.msra.mxu0 %v495
  %545 = vmatpush.bf16.msra.mxu0 %v494
  %546 = vmatpush.bf16.msra.mxu0 %v493
  %547 = vmatpush.bf16.msra.mxu0 %v492
  %548 = vmatmul.bf16.gmra.mxu0 %v338
  %v549 = vpop.f32.mrf.mxu0
  %v550 = vadd.f32 %v394, %v549
  %v551 = vpop.f32.mrf.mxu0
  %v552 = vadd.f32 %v394, %v551
  %553 = vmatmul.bf16.gmra.mxu0 %v341
  %v554 = vpop.f32.mrf.mxu0
  %v555 = vadd.f32 %v394, %v554
  %v556 = vpop.f32.mrf.mxu0
  %v557 = vadd.f32 %v394, %v556
  %558 = vdwg.mxu0
  %559 = vmatpush.bf16.msra.mxu0 %v507
  %560 = vmatpush.bf16.msra.mxu0 %v506
  %561 = vmatpush.bf16.msra.mxu0 %v505
  %562 = vmatpush.bf16.msra.mxu0 %v504
  %563 = vmatpush.bf16.msra.mxu0 %v503
  %564 = vmatpush.bf16.msra.mxu0 %v502
  %565 = vmatpush.bf16.msra.mxu0 %v501
  %566 = vmatpush.bf16.msra.mxu0 %v500
  %567 = vmatmul.bf16.gmra.mxu0 %v339
  %v568 = vpop.f32.mrf.mxu0
  %v569 = vadd.f32 %v550, %v568
  %v570 = vpop.f32.mrf.mxu0
  %v571 = vadd.f32 %v552, %v570
  %572 = vmatmul.bf16.gmra.mxu0 %v342
  %v573 = vpop.f32.mrf.mxu0
  %v574 = vadd.f32 %v555, %v573
  %v575 = vpop.f32.mrf.mxu0
  %v576 = vadd.f32 %v557, %v575
  %577 = vdwg.mxu0
  %578 = vmatpush.bf16.msra.mxu0 %v515
  %579 = vmatpush.bf16.msra.mxu0 %v514
  %580 = vmatpush.bf16.msra.mxu0 %v513
  %581 = vmatpush.bf16.msra.mxu0 %v512
  %582 = vmatpush.bf16.msra.mxu0 %v511
  %583 = vmatpush.bf16.msra.mxu0 %v510
  %584 = vmatpush.bf16.msra.mxu0 %v509
  %585 = vmatpush.bf16.msra.mxu0 %v508
  %586 = vmatmul.bf16.gmra.mxu0 %v340
  %v587 = vpop.f32.mrf.mxu0
  %v588 = vadd.f32 %v569, %v587
  %v589 = vpop.f32.mrf.mxu0
  %v590 = vadd.f32 %v571, %v589
  %591 = vmatmul.bf16.gmra.mxu0 %v343
  %v592 = vpop.f32.mrf.mxu0
  %v593 = vadd.f32 %v574, %v592
  %v594 = vpop.f32.mrf.mxu0
  %v595 = vadd.f32 %v576, %v594
  %596 = vdwg.mxu0
  %v597 = vmax.f32 %v588, 0.0
  %v598 = vmax.f32 %v590, 0.0
  %v599 = vmax.f32 %v593, 0.0
  %v600 = vmax.f32 %v595, 0.0
  %v601 = vpack.c.bf16 %v597, %v597
  %v602 = vpack.c.bf16 %v598, %v598
  %v603 = vpack.c.bf16 %v599, %v599
  %v604 = vpack.c.bf16 %v600, %v600
  %vm605 = vcmask 781312
  %606 = vst.msk [vmem:[%s9] sm:$0xf] %vm605, %v601
  %vm607 = vcmask 779264
  %608 = vst.msk [vmem:[%s9 + $0x4] sm:$0x3] %vm607, %v602
  %s609 = scalar_lea.vmem %s9, 8
  %610 = vst.msk [vmem:[%s609] sm:$0xf] %vm605, %v603
  %611 = vst.msk [vmem:[%s609 + $0x4] sm:$0x3] %vm607, %v604
  %v612 = vld [vmem:[%s5] sm:$0xf]
  %v613 = vld [vmem:[%s5 + $0x4] sm:$0x3]
  %v616 = vunpack.c.l.b16 %v612
  %v617 = vunpack.c.l.b16 %v613
  %v618 = vpack.c.b16 %v617, %v616
  %v623 = vunpack.c.l.b16 %v601
  %v624 = vunpack.c.l.b16 %v602
  %v625 = vunpack.c.l.b16 %v603
  %v626 = vunpack.c.l.b16 %v604
  %v627 = vpack.c.b16 %v624, %v623
  %v628 = vpack.c.b16 %v626, %v625
  %vm631 = vcmask 261120
  %v633 = vsel %vm631, %v618, 0
  %635 = vmatpush.bf16.msra.mxu0 0
  %636 = vmatpush.bf16.msra.mxu0 0
  %637 = vmatpush.bf16.msra.mxu0 0
  %638 = vmatpush.bf16.msra.mxu0 0
  %639 = vmatpush.bf16.msra.mxu0 0
  %640 = vmatpush.bf16.msra.mxu0 0
  %641 = vmatpush.bf16.msra.mxu0 %v628
  %642 = vmatpush.bf16.msra.mxu0 %v627
  %643 = vmatmul.bf16.gmra.mxu0 %v633
  %v644 = vpop.f32.mrf.mxu0
  %v645 = vadd.f32 0.0, %v644
  %v646 = vpop.f32.mrf.mxu0
  %v647 = vadd.f32 0.0, %v646
  %648 = vdwg.mxu0
  %v649 = vld [vmem:[%s6] sm:$0xf]
  %v650 = vld [vmem:[%s6 + $0x4] sm:$0x3]
  %v653 = vunpack.c.l.b16 %v649
  %v654 = vunpack.c.l.b16 %v650
  %v655 = vpack.c.b16 %v654, %v653
  %v657 = vsel %vm631, %v655, 0
  %659 = vmatpush.bf16.msra.mxu0 0
  %660 = vmatpush.bf16.msra.mxu0 0
  %661 = vmatpush.bf16.msra.mxu0 0
  %662 = vmatpush.bf16.msra.mxu0 0
  %663 = vmatpush.bf16.msra.mxu0 0
  %664 = vmatpush.bf16.msra.mxu0 0
  %665 = vmatpush.bf16.msra.mxu0 %v628
  %666 = vmatpush.bf16.msra.mxu0 %v627
  %667 = vmatmul.bf16.gmra.mxu0 %v657
  %v668 = vpop.f32.mrf.mxu0
  %v669 = vadd.f32 0.0, %v668
  %v670 = vpop.f32.mrf.mxu0
  %v671 = vadd.f32 0.0, %v670
  %672 = vdwg.mxu0
  %v673 = vmax.f32 %v645, %v669
  %v674 = vmax.f32 %v647, %v671
  %v675 = vpack.c.bf16 %v674, %v673
  %v676 = vld [vmem:[%s7] sm:$0xf]
  %v677 = vld [vmem:[%s7 + $0x4] sm:$0xf]
  %v678 = vld [vmem:[%s7 + $0x8] sm:$0xf]
  %v679 = vld [vmem:[%s7 + $0xc] sm:$0xf]
  %v680 = vld [vmem:[%s7 + $0x10] sm:$0xf]
  %v681 = vld [vmem:[%s7 + $0x14] sm:$0xf]
  %v682 = vld [vmem:[%s7 + $0x18] sm:$0xf]
  %v683 = vld [vmem:[%s7 + $0x1c] sm:$0xf]
  %v684 = vld [vmem:[%s7 + $0x20] sm:$0xf]
  %v685 = vld [vmem:[%s7 + $0x24] sm:$0xf]
  %v686 = vld [vmem:[%s7 + $0x28] sm:$0xf]
  %v687 = vld [vmem:[%s7 + $0x2c] sm:$0xf]
  %v688 = vld [vmem:[%s7 + $0x30] sm:$0xf]
  %v689 = vld [vmem:[%s7 + $0x34] sm:$0xf]
  %v690 = vld [vmem:[%s7 + $0x38] sm:$0xf]
  %v691 = vld [vmem:[%s7 + $0x3c] sm:$0xf]
  %v708 = vunpack.c.l.b16 %v676
  %v709 = vunpack.c.l.b16 %v677
  %v710 = vunpack.c.l.b16 %v678
  %v711 = vunpack.c.l.b16 %v679
  %v712 = vunpack.c.l.b16 %v680
  %v713 = vunpack.c.l.b16 %v681
  %v714 = vunpack.c.l.b16 %v682
  %v715 = vunpack.c.l.b16 %v683
  %v716 = vunpack.c.l.b16 %v684
  %v717 = vunpack.c.l.b16 %v685
  %v718 = vunpack.c.l.b16 %v686
  %v719 = vunpack.c.l.b16 %v687
  %v720 = vunpack.c.l.b16 %v688
  %v721 = vunpack.c.l.b16 %v689
  %v722 = vunpack.c.l.b16 %v690
  %v723 = vunpack.c.l.b16 %v691
  %v724 = vpack.c.b16 %v709, %v708
  %v725 = vpack.c.b16 %v711, %v710
  %v726 = vpack.c.b16 %v713, %v712
  %v727 = vpack.c.b16 %v715, %v714
  %v728 = vpack.c.b16 %v717, %v716
  %v729 = vpack.c.b16 %v719, %v718
  %v730 = vpack.c.b16 %v721, %v720
  %v731 = vpack.c.b16 %v723, %v722
  %740 = vmatpush.bf16.msra.mxu0 %v731
  %741 = vmatpush.bf16.msra.mxu0 %v730
  %742 = vmatpush.bf16.msra.mxu0 %v729
  %743 = vmatpush.bf16.msra.mxu0 %v728
  %744 = vmatpush.bf16.msra.mxu0 %v727
  %745 = vmatpush.bf16.msra.mxu0 %v726
  %746 = vmatpush.bf16.msra.mxu0 %v725
  %747 = vmatpush.bf16.msra.mxu0 %v724
  %748 = vmatmul.bf16.gmra.mxu0 %v675
  %v749 = vpop.f32.mrf.mxu0
  %v750 = vadd.f32 0.0, %v749
  %v751 = vpop.f32.mrf.mxu0
  %v752 = vadd.f32 0.0, %v751
  %753 = vdwg.mxu0
  %v754 = vld [vmem:[%s8] sm:$0xf]
  %v755 = vld [vmem:[%s8 + $0x4] sm:$0xf]
  %v756 = vld [vmem:[%s8 + $0x8] sm:$0xf]
  %v757 = vld [vmem:[%s8 + $0xc] sm:$0xf]
  %v758 = vld [vmem:[%s8 + $0x10] sm:$0xf]
  %v759 = vld [vmem:[%s8 + $0x14] sm:$0xf]
  %v760 = vld [vmem:[%s8 + $0x18] sm:$0xf]
  %v761 = vld [vmem:[%s8 + $0x1c] sm:$0xf]
  %v762 = vld [vmem:[%s8 + $0x20] sm:$0xf]
  %v763 = vld [vmem:[%s8 + $0x24] sm:$0xf]
  %v764 = vld [vmem:[%s8 + $0x28] sm:$0xf]
  %v765 = vld [vmem:[%s8 + $0x2c] sm:$0xf]
  %v766 = vld [vmem:[%s8 + $0x30] sm:$0xf]
  %v767 = vld [vmem:[%s8 + $0x34] sm:$0xf]
  %v768 = vld [vmem:[%s8 + $0x38] sm:$0xf]
  %v769 = vld [vmem:[%s8 + $0x3c] sm:$0xf]
  %v786 = vunpack.c.l.b16 %v754
  %v787 = vunpack.c.l.b16 %v755
  %v788 = vunpack.c.l.b16 %v756
  %v789 = vunpack.c.l.b16 %v757
  %v790 = vunpack.c.l.b16 %v758
  %v791 = vunpack.c.l.b16 %v759
  %v792 = vunpack.c.l.b16 %v760
  %v793 = vunpack.c.l.b16 %v761
  %v794 = vunpack.c.l.b16 %v762
  %v795 = vunpack.c.l.b16 %v763
  %v796 = vunpack.c.l.b16 %v764
  %v797 = vunpack.c.l.b16 %v765
  %v798 = vunpack.c.l.b16 %v766
  %v799 = vunpack.c.l.b16 %v767
  %v800 = vunpack.c.l.b16 %v768
  %v801 = vunpack.c.l.b16 %v769
  %v802 = vpack.c.b16 %v787, %v786
  %v803 = vpack.c.b16 %v789, %v788
  %v804 = vpack.c.b16 %v791, %v790
  %v805 = vpack.c.b16 %v793, %v792
  %v806 = vpack.c.b16 %v795, %v794
  %v807 = vpack.c.b16 %v797, %v796
  %v808 = vpack.c.b16 %v799, %v798
  %v809 = vpack.c.b16 %v801, %v800
  %818 = vmatpush.bf16.msra.mxu0 %v809
  %819 = vmatpush.bf16.msra.mxu0 %v808
  %820 = vmatpush.bf16.msra.mxu0 %v807
  %821 = vmatpush.bf16.msra.mxu0 %v806
  %822 = vmatpush.bf16.msra.mxu0 %v805
  %823 = vmatpush.bf16.msra.mxu0 %v804
  %824 = vmatpush.bf16.msra.mxu0 %v803
  %825 = vmatpush.bf16.msra.mxu0 %v802
  %826 = vmatmul.bf16.gmra.mxu0 %v675
  %v827 = vpop.f32.mrf.mxu0
  %v828 = vadd.f32 0.0, %v827
  %v829 = vpop.f32.mrf.mxu0
  %v830 = vadd.f32 0.0, %v829
  %831 = vdwg.mxu0
  %v832 = vmax.f32 %v750, %v828
  %v833 = vmax.f32 %v752, %v830
  %vm834 = vcmask 390144
  %835 = vst.msk [vmem:[%s10] sm:$0x3f] %vm834, %v832
  %s836 = scalar_lea.vmem %s10, 8
  %vm837 = vcmask 392198
  %838 = vst.msk [vmem:[%s836 - $0x6] sm:$0xc0] %vm837, %v832
  %vm839 = vcmask 388096
  %840 = vst.msk [vmem:[%s836 + $0x2] sm:$0xf] %vm839, %v833
  // Predicated region
  $region38: #{stack_encoder_forward.1} parent=0 // pred_check
    _
  $region39: #{stack_encoder_forward.1} parent=0 // pred_check_branch
    %842 = sbr.rel (0) target = $region41
  $region40: #{stack_encoder_forward.1} parent=0 // pred_region
    _
  $region41: #{stack_encoder_forward.1} parent=0 // pred_fallthru
    _
  // Predicated region
  $region42: #{stack_encoder_forward.1} parent=0 // pred_check
    _
  $region43: #{stack_encoder_forward.1} parent=0 // pred_check_branch
    %844 = sbr.rel (0) target = $region45
  $region44: #{stack_encoder_forward.1} parent=0 // pred_region
    _
  $region45: #{stack_encoder_forward.1} parent=0 // pred_fallthru
    _
  // Predicated region
  $region46: #{stack_encoder_forward.1} parent=0 // pred_check
    _
  $region47: #{stack_encoder_forward.1} parent=0 // pred_check_branch
    %846 = sbr.rel (0) target = $region49
  $region48: #{stack_encoder_forward.1} parent=0 // pred_region
    _
  $region49: #{stack_encoder_forward.1} parent=0 // pred_fallthru
    _
  // Predicated region
  $region50: #{stack_encoder_forward.1} parent=0 // pred_check
    _
  $region51: #{stack_encoder_forward.1} parent=0 // pred_check_branch
    %848 = sbr.rel (0) target = $region53
  $region52: #{stack_encoder_forward.1} parent=0 // pred_region
    _
  $region53: #{stack_encoder_forward.1} parent=0 // pred_fallthru
    _

</llo_original>
